<compile_context>
chip_gen: v6e
topology: v6e:2x2x1
jax: 0.10.0
libtpu: 0.0.40
codegen_flags: <defaults>
</compile_context>

<pallas_src>
import jax
import jax.numpy as jnp
from jax.experimental import pallas as pl
from jax.experimental.pallas import tpu as pltpu


def _round_up(x, m):
    return ((x + m - 1) // m) * m


def _vmem_capacity_bytes():
    # Conservative fallback = v7x per-TC VMEM (works for every generation).
    try:
        return int(pltpu.get_tpu_info().vmem_capacity_bytes)
    except Exception:
        return 64 * 1024 * 1024


# ------------------------- kernels -------------------------

def decoder_fused_kernel(x_ref, w1_ref, b1_ref, w2_ref, b2_ref, o_ref):
    # x_ref:  (tm, dim)       input float dtype (cast to bf16 here; VPU filler)
    # w1_ref: (dim, hidden)   bf16      b1_ref: (1, hidden)  f32
    # w2_ref: (hidden, N_pad) bf16      b2_ref: (1, N_pad)   f32 (resident)
    # o_ref:  (tm, N_pad)     out_dtype
    x = x_ref[...].astype(jnp.bfloat16)
    h = jnp.dot(x, w1_ref[...], preferred_element_type=jnp.float32)
    h = h + b1_ref[...]
    h = jnp.where(h >= 0, h, 0.01 * h)              # LeakyReLU (slope 0.01), f32 VPU
    out = jnp.dot(h.astype(jnp.bfloat16), w2_ref[...],
                  preferred_element_type=jnp.float32)
    out = out + b2_ref[...]
    o_ref[...] = out.astype(o_ref.dtype)


def decoder_tiled_kernel(x_ref, w1_ref, b1_ref, w2_ref, b2_ref, o_ref, h_ref):
    # Fallback path for token counts whose W2 does not fit VMEM.
    # h is computed once per row tile (token-tile index 0) and cached.
    j = pl.program_id(1)

    @pl.when(j == 0)
    def _():
        x = x_ref[...].astype(jnp.bfloat16)
        h = jnp.dot(x, w1_ref[...], preferred_element_type=jnp.float32)
        h = h + b1_ref[...]
        h = jnp.where(h >= 0, h, 0.01 * h)
        h_ref[...] = h.astype(h_ref.dtype)

    out = jnp.dot(h_ref[...], w2_ref[...], preferred_element_type=jnp.float32)
    out = out + b2_ref[...]
    o_ref[...] = out.astype(o_ref.dtype)


# ------------------------- wrapper -------------------------

def decoder_forward(x, w1, b1, w2, b2, *, out_dtype=jnp.bfloat16):
    """x: (B, S, dim) -> (B, S, tokens).  Weights stored as (in, out)."""
    B, S, dim = x.shape
    hidden = w1.shape[1]
    tokens = w2.shape[1]
    M = B * S
    out_bytes = jnp.dtype(out_dtype).itemsize

    vmem_cap = _vmem_capacity_bytes()
    cap_limit = int(0.8 * vmem_cap)                  # headroom for Mosaic scratch
    big_vmem = vmem_cap >= 100 * 1024 * 1024         # v5e/v6e (128 MiB) vs v7x (64 MiB)

    # ---- row tile selection (>= 2 row tiles when M >= 32 for v7x megacore) ----
    tm = 512 if big_vmem else 256
    if M >= 32:
        tm = min(tm, _round_up(pl.cdiv(M, 2), 16))
    tm = _round_up(max(16, min(tm, _round_up(M, 16))), 16)

    N128 = _round_up(tokens, 128)                    # lane-dense output width

    # ---- fused (token-axis collapsed) vs token-tiled decision ----
    def fused_bytes(tm_):
        return int(1.25 * (
            2 * tm_ * dim * x.dtype.itemsize         # x tiles (double-buffered)
            + 2 * tm_ * N128 * out_bytes             # out tiles (double-buffered)
            + dim * hidden * 2 + hidden * 4          # W1 bf16 + b1 f32 (resident)
            + hidden * N128 * 2 + N128 * 4           # W2 bf16 + b2 f32 (resident)
            + tm_ * hidden * 4 + tm_ * N128 * 4))    # in-kernel f32 intermediates

    tm_f = tm
    while tm_f > 64 and fused_bytes(tm_f) > cap_limit:
        tm_f = _round_up(tm_f // 2, 16)
    use_fused = fused_bytes(tm_f) <= cap_limit

    if use_fused:
        tm = tm_f
        tn = N128
        N_pad = N128
    else:
        tn = 1024 if big_vmem else 512
        tn = _round_up(max(128, min(tn, N128)), 128)
        N_pad = _round_up(tokens, tn)

    M_pad = _round_up(M, tm)

    # ---- operand prep (no wrapper-side cast of x; pad only if needed) ----
    x2d = x.reshape(M, dim)
    if M_pad != M:
        x2d = jnp.pad(x2d, ((0, M_pad - M), (0, 0)))
    if N_pad != tokens:
        w2p = jnp.pad(w2, ((0, 0), (0, N_pad - tokens)))
        b2p = jnp.pad(b2, ((0, N_pad - tokens),))
    else:
        w2p, b2p = w2, b2

    w1_bf = w1.astype(jnp.bfloat16)
    w2_bf = w2p.astype(jnp.bfloat16)
    b1_2d = b1.reshape(1, hidden).astype(jnp.float32)
    b2_2d = b2p.reshape(1, N_pad).astype(jnp.float32)

    flops = 2 * M_pad * (dim * hidden + hidden * N_pad)
    bytes_accessed = (x2d.size * x2d.dtype.itemsize
                      + w1_bf.size * 2 + w2_bf.size * 2
                      + b1_2d.size * 4 + b2_2d.size * 4
                      + M_pad * N_pad * out_bytes)
    cost = pl.CostEstimate(flops=flops, transcendentals=0,
                           bytes_accessed=bytes_accessed)

    if use_fused:
        vmem_limit = int(min(cap_limit,
                             max(32 * 1024 * 1024, 2 * fused_bytes(tm))))
        out2d = pl.pallas_call(
            decoder_fused_kernel,
            out_shape=jax.ShapeDtypeStruct((M_pad, N_pad), out_dtype),
            grid_spec=pltpu.PrefetchScalarGridSpec(
                num_scalar_prefetch=0,
                grid=(M_pad // tm,),
                in_specs=[
                    pl.BlockSpec((tm, dim), lambda i: (i, 0)),       # x row tile
                    pl.BlockSpec((dim, hidden), lambda i: (0, 0)),   # W1 resident
                    pl.BlockSpec((1, hidden), lambda i: (0, 0)),     # b1
                    pl.BlockSpec((hidden, N_pad), lambda i: (0, 0)), # W2 resident
                    pl.BlockSpec((1, N_pad), lambda i: (0, 0)),      # b2
                ],
                out_specs=pl.BlockSpec((tm, N_pad), lambda i: (i, 0)),
            ),
            compiler_params=pltpu.CompilerParams(
                dimension_semantics=("parallel",),
                vmem_limit_bytes=vmem_limit,
            ),
            cost_estimate=cost,
        )(x2d, w1_bf, b1_2d, w2_bf, b2_2d)
    else:
        tiled_bytes = int(1.25 * (
            2 * tm * dim * x.dtype.itemsize
            + 2 * tm * tn * out_bytes
            + dim * hidden * 2 + hidden * 4
            + 2 * hidden * tn * 2 + 2 * tn * 4
            + tm * hidden * 2                         # bf16 h scratch
            + tm * hidden * 4 + tm * tn * 4))
        vmem_limit = int(min(cap_limit,
                             max(32 * 1024 * 1024, 2 * tiled_bytes)))
        out2d = pl.pallas_call(
            decoder_tiled_kernel,
            out_shape=jax.ShapeDtypeStruct((M_pad, N_pad), out_dtype),
            grid_spec=pltpu.PrefetchScalarGridSpec(
                num_scalar_prefetch=0,
                grid=(M_pad // tm, N_pad // tn),
                in_specs=[
                    pl.BlockSpec((tm, dim), lambda i, j: (i, 0)),
                    pl.BlockSpec((dim, hidden), lambda i, j: (0, 0)),
                    pl.BlockSpec((1, hidden), lambda i, j: (0, 0)),
                    pl.BlockSpec((hidden, tn), lambda i, j: (0, j)),
                    pl.BlockSpec((1, tn), lambda i, j: (0, j)),
                ],
                out_specs=pl.BlockSpec((tm, tn), lambda i, j: (i, j)),
                scratch_shapes=[pltpu.VMEM((tm, hidden), jnp.bfloat16)],
            ),
            compiler_params=pltpu.CompilerParams(
                dimension_semantics=("parallel", "arbitrary"),
                vmem_limit_bytes=vmem_limit,
            ),
            cost_estimate=cost,
        )(x2d, w1_bf, b1_2d, w2_bf, b2_2d)

    return out2d[:M, :tokens].reshape(B, S, tokens)


def reference_forward(x, w1, b1, w2, b2):
    h = jnp.dot(x, w1) + b1
    h = jnp.where(h >= 0, h, 0.01 * h)
    return jnp.dot(h, w2) + b2


if __name__ == "__main__":
    # Shapes consistent with Decoder(dim=32, tokens_num=128) on (B, S, dim).
    B, S, dim, tokens_num = 2, 8, 32, 128
    hidden = dim * 2

    key = jax.random.PRNGKey(0)
    kx, k1, kb1, k2, kb2 = jax.random.split(key, 5)

    x = jax.random.normal(kx, (B, S, dim), dtype=jnp.float32)
    # Deterministic parameter init (uniform, roughly matching nn.Linear scale).
    w1 = jax.random.uniform(k1, (dim, hidden), jnp.float32, -1.0, 1.0) / jnp.sqrt(dim)
    b1 = jax.random.uniform(kb1, (hidden,), jnp.float32, -1.0, 1.0) / jnp.sqrt(dim)
    w2 = jax.random.uniform(k2, (hidden, tokens_num), jnp.float32, -1.0, 1.0) / jnp.sqrt(hidden)
    b2 = jax.random.uniform(kb2, (tokens_num,), jnp.float32, -1.0, 1.0) / jnp.sqrt(hidden)

    out = decoder_forward(x, w1, b1, w2, b2)
    jax.block_until_ready(out)

    ref = reference_forward(x, w1, b1, w2, b2)
    assert out.shape == (B, S, tokens_num)
    # bf16 MXU inputs (f32 accumulation) + bf16 output -> loosened tolerance.
    assert jnp.allclose(out.astype(jnp.float32), ref, atol=5e-2, rtol=5e-2), \
        "mismatch vs reference"

    print("KERNEL_OK")
</pallas_src>

<mosaic_0001>
module attributes {stable_mosaic.version = 11 : i64} {
  func.func @decoder_fused_kernel(%arg0: i32, %arg1: memref<16x32xf32, #tpu.memory_space<vmem>>, %arg2: memref<32x64xbf16, #tpu.memory_space<vmem>>, %arg3: memref<1x64xf32, #tpu.memory_space<vmem>>, %arg4: memref<64x128xbf16, #tpu.memory_space<vmem>>, %arg5: memref<1x128xf32, #tpu.memory_space<vmem>>, %arg6: memref<16x128xbf16, #tpu.memory_space<vmem>>) attributes {dimension_semantics = [#tpu.dimension_semantics<parallel>], iteration_bounds = array<i64: 1>, scalar_prefetch = 0 : i64, scratch_operands = 0 : i64, tpu.core_type = #tpu.core_type<tc>, window_params = [{transform_indices = @transform_0, window_bounds = array<i64: 16, 32>}, {pipeline_mode = #tpu.pipeline_mode<synchronous>, transform_indices = @transform_1, window_bounds = array<i64: 32, 64>}, {pipeline_mode = #tpu.pipeline_mode<synchronous>, transform_indices = @transform_2, window_bounds = array<i64: 1, 64>}, {pipeline_mode = #tpu.pipeline_mode<synchronous>, transform_indices = @transform_3, window_bounds = array<i64: 64, 128>}, {pipeline_mode = #tpu.pipeline_mode<synchronous>, transform_indices = @transform_4, window_bounds = array<i64: 1, 128>}, {transform_indices = @transform_5, window_bounds = array<i64: 16, 128>}]} {
    %c0 = arith.constant 0 : index
    %c0_0 = arith.constant 0 : index
    %0 = vector.load %arg1[%c0, %c0_0] : memref<16x32xf32, #tpu.memory_space<vmem>>, vector<16x32xf32>
    %1 = arith.truncf %0 : vector<16x32xf32> to vector<16x32xbf16>
    %c0_1 = arith.constant 0 : index
    %c0_2 = arith.constant 0 : index
    %2 = vector.load %arg2[%c0_1, %c0_2] : memref<32x64xbf16, #tpu.memory_space<vmem>>, vector<32x64xbf16>
    %cst = arith.constant dense<0.000000e+00> : vector<16x64xf32>
    %3 = tpu.matmul %1, %2, %cst {dimension_numbers = #tpu.dot_dimension_numbers<[1], [0], [0], [1], [0, 0, 1, 1], [], []>} : vector<16x32xbf16>, vector<32x64xbf16>, vector<16x64xf32> -> vector<16x64xf32>
    %c0_3 = arith.constant 0 : index
    %c0_4 = arith.constant 0 : index
    %4 = vector.load %arg3[%c0_3, %c0_4] : memref<1x64xf32, #tpu.memory_space<vmem>>, vector<1x64xf32>
    %5 = vector.broadcast %4 : vector<1x64xf32> to vector<16x64xf32>
    %6 = arith.addf %3, %5 : vector<16x64xf32>
    %cst_5 = arith.constant 0.000000e+00 : f32
    %7 = vector.broadcast %cst_5 : f32 to vector<16x64xf32>
    %8 = arith.cmpf oge, %6, %7 : vector<16x64xf32>
    %cst_6 = arith.constant 0.00999999977 : f32
    %9 = vector.broadcast %cst_6 : f32 to vector<16x64xf32>
    %10 = arith.mulf %9, %6 : vector<16x64xf32>
    %11 = arith.select %8, %6, %10 : vector<16x64xi1>, vector<16x64xf32>
    %12 = arith.truncf %11 : vector<16x64xf32> to vector<16x64xbf16>
    %c0_7 = arith.constant 0 : index
    %c0_8 = arith.constant 0 : index
    %13 = vector.load %arg4[%c0_7, %c0_8] : memref<64x128xbf16, #tpu.memory_space<vmem>>, vector<64x128xbf16>
    %cst_9 = arith.constant dense<0.000000e+00> : vector<16x128xf32>
    %14 = tpu.matmul %12, %13, %cst_9 {dimension_numbers = #tpu.dot_dimension_numbers<[1], [0], [0], [1], [0, 0, 1, 1], [], []>} : vector<16x64xbf16>, vector<64x128xbf16>, vector<16x128xf32> -> vector<16x128xf32>
    %c0_10 = arith.constant 0 : index
    %c0_11 = arith.constant 0 : index
    %15 = vector.load %arg5[%c0_10, %c0_11] : memref<1x128xf32, #tpu.memory_space<vmem>>, vector<1x128xf32>
    %16 = vector.broadcast %15 : vector<1x128xf32> to vector<16x128xf32>
    %17 = arith.addf %14, %16 : vector<16x128xf32>
    %18 = arith.truncf %17 : vector<16x128xf32> to vector<16x128xbf16>
    %c0_12 = arith.constant 0 : index
    %c0_13 = arith.constant 0 : index
    %19 = vector.load %arg6[%c0_12, %c0_13] : memref<16x128xbf16, #tpu.memory_space<vmem>>, vector<16x128xbf16>
    tpu.vector_store %arg6[%c0_12, %c0_13], %18 {strides = array<i32>} : memref<16x128xbf16, #tpu.memory_space<vmem>>, vector<16x128xbf16>,
    return
  }
  func.func @transform_0(%arg0: i32) -> (i32, i32) {
    %c0_i32 = arith.constant 0 : i32
    %c0_i32_0 = arith.constant 0 : i32
    return %arg0, %c0_i32 : i32, i32
  }
  func.func @transform_1(%arg0: i32) -> (i32, i32) {
    %c0_i32 = arith.constant 0 : i32
    %c0_i32_0 = arith.constant 0 : i32
    %c0_i32_1 = arith.constant 0 : i32
    return %c0_i32, %c0_i32_0 : i32, i32
  }
  func.func @transform_2(%arg0: i32) -> (i32, i32) {
    %c0_i32 = arith.constant 0 : i32
    %c0_i32_0 = arith.constant 0 : i32
    %c0_i32_1 = arith.constant 0 : i32
    return %c0_i32, %c0_i32_0 : i32, i32
  }
  func.func @transform_3(%arg0: i32) -> (i32, i32) {
    %c0_i32 = arith.constant 0 : i32
    %c0_i32_0 = arith.constant 0 : i32
    %c0_i32_1 = arith.constant 0 : i32
    return %c0_i32, %c0_i32_0 : i32, i32
  }
  func.func @transform_4(%arg0: i32) -> (i32, i32) {
    %c0_i32 = arith.constant 0 : i32
    %c0_i32_0 = arith.constant 0 : i32
    %c0_i32_1 = arith.constant 0 : i32
    return %c0_i32, %c0_i32_0 : i32, i32
  }
  func.func @transform_5(%arg0: i32) -> (i32, i32) {
    %c0_i32 = arith.constant 0 : i32
    %c0_i32_0 = arith.constant 0 : i32
    return %arg0, %c0_i32 : i32, i32
  }
}

</mosaic_0001>

<llo_original>
// kernel: tpu_custom_call.1
$region0: #{tpu_custom_call.1}
  #allocation0 [shape = 'u32[]', space=smem, size = 0x4, offset = 0x4, fixed_abs, tag = 'smem constant byte address 0x4 - core index']
  #allocation1 [shape = 'u32[144,128]{1,0:T(1,128)}', space=vmem, size = 0x12000, scoped, tag = 'internal scratch']
  %s0 = inlined_call_operand.hbm [shape: f32[16,32], index: 0, kind: input, shape index: {}]
  %s1 = inlined_call_operand.hbm [shape: bf16[32,64], index: 1, kind: input, shape index: {}]
  %s2 = inlined_call_operand.vmem [shape: f32[1,64], index: 2, kind: input, shape index: {}]
  %s3 = inlined_call_operand.hbm [shape: bf16[64,128], index: 3, kind: input, shape index: {}]
  %s4 = inlined_call_operand.vmem [shape: f32[1,128], index: 4, kind: input, shape index: {}]
  %s5 = inlined_call_operand.hbm [shape: bf16[16,128], index: 5, kind: output, shape index: {}]
  %s6 = sld [smem:[#allocation0]]
  $region42: #{tpu_custom_call.1} parent=0
    _
  %s8 = ssub.s32 1, %s6
  %s9 = scalar_select 0, %s8, %s6
  $region1: #{tpu_custom_call.1} parent=0
    #allocation2 [shape = 'u8[8192]{0}', space=vmem, size = 0x2000, scoped, tag = 'input window, operand 0, single buffered']
    #allocation3 [shape = 's32[1]{0}', space=sflag, size = 0x4, scoped, tag = 'scoped memory for tpu_custom_call.1']
    #allocation4 [shape = 's32[1]{0}', space=sflag, size = 0x4, scoped, tag = 'scoped memory for tpu_custom_call.1']
    #allocation5 [shape = 'u8[8192]{0}', space=vmem, size = 0x2000, scoped, tag = 'input window, operand 1, single buffered']
    #allocation6 [shape = 's32[1]{0}', space=sflag, size = 0x4, scoped, tag = 'scoped memory for tpu_custom_call.1']
    #allocation7 [shape = 'u8[16384]{0}', space=vmem, size = 0x4000, scoped, tag = 'input window, operand 3, single buffered']
    #allocation8 [shape = 'u8[4096]{0}', space=vmem, size = 0x1000, scoped, tag = 'output window, operand 0, single buffered']
    %10 = vsyncpa [#allocation3], 0
    %11 = vsyncpa [#allocation6], 0
    %12 = vsyncpa [#allocation4], 0
    // Predicated region
    $region2: #{tpu_custom_call.1} parent=1 // pred_check
      _
    $region3: #{tpu_custom_call.1} parent=1 // pred_check_branch
      %14 = sbr.rel (0) target = $region5
    $region4: #{tpu_custom_call.1} parent=1 // pred_region
      %s16 = ssub.s32 256, 256
      %17 = vsyncadd [#allocation3], %s16
      %s18 = sshll.u32 [#allocation2], 4
      %s19 = int_to_ptr.vmem [resolvable:$true] %s18
      %24 = dma.hbm_to_vmem [thread:$0]  %s0, 256, %s19, [#allocation3], 128, 128, 8
    $region5: #{tpu_custom_call.1} parent=1 // pred_fallthru
      _
    // Predicated region
    $region6: #{tpu_custom_call.1} parent=1 // pred_check
      _
    $region7: #{tpu_custom_call.1} parent=1 // pred_check_branch
      %26 = sbr.rel (0) target = $region9
    $region8: #{tpu_custom_call.1} parent=1 // pred_region
      %s28 = ssub.s32 256, 256
      %29 = vsyncadd [#allocation6], %s28
      %s30 = sshll.u32 [#allocation5], 4
      %s31 = int_to_ptr.vmem [resolvable:$true] %s30
      %36 = dma.hbm_to_vmem [thread:$0]  %s1, 256, %s31, [#allocation6], 64, 64, 4
    $region9: #{tpu_custom_call.1} parent=1 // pred_fallthru
      _
    // Predicated region
    $region10: #{tpu_custom_call.1} parent=1 // pred_check
      _
    $region11: #{tpu_custom_call.1} parent=1 // pred_check_branch
      %38 = sbr.rel (0) target = $region13
    $region12: #{tpu_custom_call.1} parent=1 // pred_region
      _
    $region13: #{tpu_custom_call.1} parent=1 // pred_fallthru
      _
    // Predicated region
    $region14: #{tpu_custom_call.1} parent=1 // pred_check
      _
    $region15: #{tpu_custom_call.1} parent=1 // pred_check_branch
      %40 = sbr.rel (0) target = $region17
    $region16: #{tpu_custom_call.1} parent=1 // pred_region
      %s42 = ssub.s32 512, 512
      %43 = vsyncadd [#allocation6], %s42
      %s44 = sshll.u32 [#allocation7], 4
      %s45 = int_to_ptr.vmem [resolvable:$true] %s44
      %50 = dma.hbm_to_vmem [thread:$0]  %s3, 512, %s45, [#allocation6], 64, 64, 4
    $region17: #{tpu_custom_call.1} parent=1 // pred_fallthru
      _
    // Predicated region
    $region18: #{tpu_custom_call.1} parent=1 // pred_check
      _
    $region19: #{tpu_custom_call.1} parent=1 // pred_check_branch
      %52 = sbr.rel (0) target = $region21
    $region20: #{tpu_custom_call.1} parent=1 // pred_region
      _
    $region21: #{tpu_custom_call.1} parent=1 // pred_fallthru
      _
    // Predicated region
    $region22: #{tpu_custom_call.1} parent=1 // pred_check
      _
    $region23: #{tpu_custom_call.1} parent=1 // pred_check_branch
      %54 = sbr.rel (0) target = $region25
    $region24: #{tpu_custom_call.1} parent=1 // pred_region
      %55 = dma.done [#allocation3], 256
    $region25: #{tpu_custom_call.1} parent=1 // pred_fallthru
      _
    // Predicated region
    $region26: #{tpu_custom_call.1} parent=1 // pred_check
      _
    $region27: #{tpu_custom_call.1} parent=1 // pred_check_branch
      %57 = sbr.rel (0) target = $region29
    $region28: #{tpu_custom_call.1} parent=1 // pred_region
      %58 = dma.done [#allocation6], 256
    $region29: #{tpu_custom_call.1} parent=1 // pred_fallthru
      _
    // Predicated region
    $region30: #{tpu_custom_call.1} parent=1 // pred_check
      _
    $region31: #{tpu_custom_call.1} parent=1 // pred_check_branch
      %60 = sbr.rel (0) target = $region33
    $region32: #{tpu_custom_call.1} parent=1 // pred_region
      %61 = dma.done [#allocation6], 512
    $region33: #{tpu_custom_call.1} parent=1 // pred_fallthru
      _
    %v63 = vld [vmem:[#allocation2] sm:$0xff]
    %v64 = vld [vmem:[#allocation2 + $0x8] sm:$0xff]
    %v65 = vpack.c.bf16 %v64, %v63
    %v66 = vld [vmem:[#allocation5] sm:$0xf]
    %v67 = vld [vmem:[#allocation5 + $0x4] sm:$0xf]
    %v68 = vld [vmem:[#allocation5 + $0x8] sm:$0xf]
    %v69 = vld [vmem:[#allocation5 + $0xc] sm:$0xf]
    %v70 = vld [vmem:[%s2] sm:$0x1]
    %v72 = vlaneseq
    %v73 = vshrl.u32 %v72, 7
    %v74 = vsub.s32 0, %v73
    %v75 = vrot.slane %v70, %v74
    %v81 = vunpack.c.l.b16 %v66
    %v82 = vunpack.c.l.b16 %v67
    %v83 = vunpack.c.l.b16 %v68
    %v84 = vunpack.c.l.b16 %v69
    %v85 = vpack.c.b16 %v82, %v81
    %v86 = vpack.c.b16 %v84, %v83
    %vm89 = vcmask 261120
    %v91 = vsel %vm89, %v65, 0
    %93 = vmatprep.subr.bf16.mxu0 0
    %94 = vmatpush1.bf16.msra.mxu0 0
    %95 = vmatprep.subr.bf16.mxu0 0
    %96 = vmatpush1.bf16.msra.mxu0 0
    %97 = vmatprep.subr.bf16.mxu0 0
    %98 = vmatpush1.bf16.msra.mxu0 0
    %99 = vmatprep.subr.bf16.mxu0 0
    %100 = vmatpush1.bf16.msra.mxu0 0
    %101 = vmatprep.subr.bf16.mxu0 0
    %102 = vmatpush1.bf16.msra.mxu0 0
    %103 = vmatprep.subr.bf16.mxu0 0
    %104 = vmatpush1.bf16.msra.mxu0 0
    %105 = vmatprep.subr.bf16.mxu0 0
    %106 = vmatpush1.bf16.msra.mxu0 %v86
    %107 = vmatprep.subr.bf16.mxu0 0
    %108 = vmatpush1.bf16.msra.mxu0 %v85
    %109 = vmatprep.subr.bf16.mxu0 0
    %110 = vmatpush2.bf16.msra.mxu0 0
    %111 = vmatprep.subr.bf16.mxu0 0
    %112 = vmatpush2.bf16.msra.mxu0 0
    %113 = vmatprep.subr.bf16.mxu0 0
    %114 = vmatpush2.bf16.msra.mxu0 0
    %115 = vmatprep.subr.bf16.mxu0 0
    %116 = vmatpush2.bf16.msra.mxu0 0
    %117 = vmatprep.subr.bf16.mxu0 0
    %118 = vmatpush2.bf16.msra.mxu0 0
    %119 = vmatprep.subr.bf16.mxu0 0
    %120 = vmatpush2.bf16.msra.mxu0 0
    %121 = vmatprep.subr.bf16.mxu0 0
    %122 = vmatpush2.bf16.msra.mxu0 0
    %123 = vmatprep.subr.bf16.mxu0 0
    %124 = vmatpush2.bf16.msra.mxu0 0
    %125 = vmatprep.mubr.bf16.mxu0 0
    %126 = vmatmul.mubr.bf16.gmra.mxu0 %v91
    %v127 = vpop.f32.mrf.mxu0
    %v128 = vadd.f32 %v75, %v127
    %v129 = vpop.f32.mrf.mxu0
    %v130 = vpop.f32.mrf.mxu0
    %v131 = vadd.f32 %v75, %v130
    %v132 = vpop.f32.mrf.mxu0
    %133 = vdwg.mxu0
    %vm134 = vcmp.ge.f32.partialorder %v128, 0.0
    %vm135 = vcmp.ge.f32.partialorder %v131, 0.0
    %v136 = vmul.f32 %v128, 0.01
    %v137 = vmul.f32 %v131, 0.01
    %v138 = vsel %vm134, %v128, %v136
    %v139 = vsel %vm135, %v131, %v137
    %v140 = vpack.c.bf16 %v139, %v138
    %v141 = vld [vmem:[#allocation7] sm:$0xf]
    %v142 = vld [vmem:[#allocation7 + $0x4] sm:$0xf]
    %v143 = vld [vmem:[#allocation7 + $0x8] sm:$0xf]
    %v144 = vld [vmem:[#allocation7 + $0xc] sm:$0xf]
    %v145 = vld [vmem:[#allocation7 + $0x10] sm:$0xf]
    %v146 = vld [vmem:[#allocation7 + $0x14] sm:$0xf]
    %v147 = vld [vmem:[#allocation7 + $0x18] sm:$0xf]
    %v148 = vld [vmem:[#allocation7 + $0x1c] sm:$0xf]
    %v149 = vld [vmem:[%s4] sm:$0x1]
    %v151 = vlaneseq
    %v152 = vshrl.u32 %v151, 7
    %v153 = vsub.s32 0, %v152
    %v154 = vrot.slane %v149, %v153
    %v164 = vunpack.c.l.b16 %v141
    %v165 = vunpack.c.l.b16 %v142
    %v166 = vunpack.c.l.b16 %v143
    %v167 = vunpack.c.l.b16 %v144
    %v168 = vunpack.c.l.b16 %v145
    %v169 = vunpack.c.l.b16 %v146
    %v170 = vunpack.c.l.b16 %v147
    %v171 = vunpack.c.l.b16 %v148
    %v172 = vpack.c.b16 %v165, %v164
    %v173 = vpack.c.b16 %v167, %v166
    %v174 = vpack.c.b16 %v169, %v168
    %v175 = vpack.c.b16 %v171, %v170
    %vm180 = vcmask 523264
    %v182 = vsel %vm180, %v140, 0
    %184 = vmatprep.subr.bf16.mxu0 0
    %185 = vmatpush1.bf16.msra.mxu0 0
    %186 = vmatprep.subr.bf16.mxu0 0
    %187 = vmatpush1.bf16.msra.mxu0 0
    %188 = vmatprep.subr.bf16.mxu0 0
    %189 = vmatpush1.bf16.msra.mxu0 0
    %190 = vmatprep.subr.bf16.mxu0 0
    %191 = vmatpush1.bf16.msra.mxu0 0
    %192 = vmatprep.subr.bf16.mxu0 0
    %193 = vmatpush1.bf16.msra.mxu0 %v175
    %194 = vmatprep.subr.bf16.mxu0 0
    %195 = vmatpush1.bf16.msra.mxu0 %v174
    %196 = vmatprep.subr.bf16.mxu0 0
    %197 = vmatpush1.bf16.msra.mxu0 %v173
    %198 = vmatprep.subr.bf16.mxu0 0
    %199 = vmatpush1.bf16.msra.mxu0 %v172
    %200 = vmatprep.subr.bf16.mxu0 0
    %201 = vmatpush2.bf16.msra.mxu0 0
    %202 = vmatprep.subr.bf16.mxu0 0
    %203 = vmatpush2.bf16.msra.mxu0 0
    %204 = vmatprep.subr.bf16.mxu0 0
    %205 = vmatpush2.bf16.msra.mxu0 0
    %206 = vmatprep.subr.bf16.mxu0 0
    %207 = vmatpush2.bf16.msra.mxu0 0
    %208 = vmatprep.subr.bf16.mxu0 0
    %209 = vmatpush2.bf16.msra.mxu0 0
    %210 = vmatprep.subr.bf16.mxu0 0
    %211 = vmatpush2.bf16.msra.mxu0 0
    %212 = vmatprep.subr.bf16.mxu0 0
    %213 = vmatpush2.bf16.msra.mxu0 0
    %214 = vmatprep.subr.bf16.mxu0 0
    %215 = vmatpush2.bf16.msra.mxu0 0
    %216 = vmatprep.mubr.bf16.mxu0 0
    %217 = vmatmul.mubr.bf16.gmra.mxu0 %v182
    %v218 = vpop.f32.mrf.mxu0
    %v219 = vadd.f32 %v154, %v218
    %v220 = vpop.f32.mrf.mxu0
    %v221 = vpop.f32.mrf.mxu0
    %v222 = vadd.f32 %v154, %v221
    %v223 = vpop.f32.mrf.mxu0
    %224 = vdwg.mxu0
    %v225 = vpack.c.bf16 %v222, %v219
    %v227 = vunpack.c.l.b16 %v225
    %v228 = vunpack.c.h.b16 %v225
    %v229 = vpack.c.b16 %v227, %v227
    %v230 = vpack.c.b16 %v228, %v228
    %233 = vst [vmem:[#allocation8] sm:$0xf] %v229
    %234 = vst [vmem:[#allocation8 + $0x4] sm:$0xf] %v230
    // Predicated region
    $region34: #{tpu_custom_call.1} parent=1 // pred_check
      _
    $region35: #{tpu_custom_call.1} parent=1 // pred_check_branch
      %236 = sbr.rel (0) target = $region37
    $region36: #{tpu_custom_call.1} parent=1 // pred_region
      %s238 = ssub.s32 128, 128
      %239 = vsyncadd [#allocation4], %s238
      %s240 = sshll.u32 [#allocation8], 4
      %s241 = int_to_ptr.vmem [resolvable:$true] %s240
      %246 = dma.vmem_to_hbm [thread:$0]  %s241, 128, %s5, [#allocation4], 64, 64, 4
    $region37: #{tpu_custom_call.1} parent=1 // pred_fallthru
      _
    // Predicated region
    $region38: #{tpu_custom_call.1} parent=1 // pred_check
      _
    $region39: #{tpu_custom_call.1} parent=1 // pred_check_branch
      %248 = sbr.rel (0) target = $region41
    $region40: #{tpu_custom_call.1} parent=1 // pred_region
      %249 = dma.done [#allocation4], 128
    $region41: #{tpu_custom_call.1} parent=1 // pred_fallthru
      _
    %250 = vsyncpa [#allocation3], 1
    %251 = vsyncpa [#allocation6], 1
    %252 = vsyncpa [#allocation4], 1

</llo_original>
